<compile_context>
chip_gen: v6e
topology: v6e:2x2x1
jax: 0.10.0
libtpu: 0.0.40
codegen_flags: <defaults>
</compile_context>

<pallas_src>
import functools

import jax
import jax.numpy as jnp
from jax.experimental import pallas as pl
from jax.experimental.pallas import tpu as pltpu

_LANE = 128
_MAX_TILE = 2048  # lanes per grid step: (8, 2048) f32 = 64 KiB per input buffer


def _round_up(x, m):
    return (x + m - 1) // m * m


def _bbox_loss_kernel(x_ref, out_ref, acc_ref, *,
                      l1_weight, giou_weight, n_obj, tile_n):
    i = pl.program_id(0)

    @pl.when(i == 0)
    def _init():
        acc_ref[0] = 0.0
        acc_ref[1] = 0.0

    x = x_ref[...].astype(jnp.float32)              # (8, tile_n)

    # ---- L1 term: rolling by 4 sublanes aligns target rows under pred rows;
    # every |pred - tgt| coordinate diff shows up exactly twice.
    x_swap = pltpu.roll(x, shift=4, axis=0)
    l1_partial = 0.5 * jnp.sum(jnp.abs(x - x_swap))

    # ---- cxcywh -> xyxy, dense over all 8 rows. roll(+6) == roll(-2): puts
    # the (w, h) rows underneath the (cx, cy) rows for both pred and target.
    wh = pltpu.roll(x, shift=6, axis=0)
    lo = x - 0.5 * wh             # rows 0,1: pred x0,y0 | rows 4,5: tgt x0,y0
    hi = x + 0.5 * wh             # rows 0,1: pred x1,y1 | rows 4,5: tgt x1,y1
    lo_sw = pltpu.roll(lo, shift=4, axis=0)   # rows 0,1: tgt x0,y0
    hi_sw = pltpu.roll(hi, shift=4, axis=0)   # rows 0,1: tgt x1,y1

    # intersection width/height live in rows 0,1; roll(+7) == roll(-1) pairs
    # row 1 (height) under row 0 (width) so row 0 of the product is iw*ih.
    inter_wh = jnp.maximum(jnp.minimum(hi, hi_sw) - jnp.maximum(lo, lo_sw), 0.0)
    inter_xy = inter_wh * pltpu.roll(inter_wh, shift=7, axis=0)

    # box areas: row 0 = pred area, row 4 = tgt area (rolled to row 0 below)
    box_wh = hi - lo
    area = box_wh * pltpu.roll(box_wh, shift=7, axis=0)
    area_sw = pltpu.roll(area, shift=4, axis=0)

    # smallest enclosing box: row 0 = cw * ch (both clamped at 0)
    enc_wh = jnp.maximum(jnp.maximum(hi, hi_sw) - jnp.minimum(lo, lo_sw), 0.0)
    enc_xy = enc_wh * pltpu.roll(enc_wh, shift=7, axis=0)

    # ---- scalar tail on the row-0 strips only
    inter = inter_xy[0:1, :]
    area_p = area[0:1, :]
    area_t = area_sw[0:1, :]
    area_c = enc_xy[0:1, :]
    union = area_p + area_t - inter

    # Mask zero-padded lanes of the (possibly partial) last tile BEFORE the
    # divides: padded lanes are all-zero boxes (union == area_c == 0).
    lane = jax.lax.broadcasted_iota(jnp.int32, (1, tile_n), 1)
    valid = (lane + i * tile_n) < n_obj
    union_s = jnp.where(valid, union, 1.0)
    area_c_s = jnp.where(valid, area_c, 1.0)

    iou = inter / union_s
    giou = iou - (area_c_s - union_s) / area_c_s
    giou_loss = jnp.where(valid, 1.0 - giou, 0.0)

    acc_ref[0] += l1_partial
    acc_ref[1] += jnp.sum(giou_loss)

    @pl.when(i == pl.num_programs(0) - 1)
    def _finalize():
        l1_mean = acc_ref[0] / jnp.float32(4 * n_obj)
        giou_mean = acc_ref[1] / jnp.float32(n_obj)
        out_ref[0] = (jnp.float32(l1_weight) * l1_mean
                      + jnp.float32(giou_weight) * giou_mean)


def _bbox_loss_pallas(pred, target, l1_weight, giou_weight):
    n_obj = pred.shape[0]
    # Single concat + single transpose -> (8, N) packed block.
    packed = jnp.concatenate(
        [jnp.asarray(pred, jnp.float32), jnp.asarray(target, jnp.float32)],
        axis=1).T                                                  # (8, N)

    tile_n = min(_round_up(n_obj, _LANE), _MAX_TILE)
    n_pad = _round_up(n_obj, tile_n)
    if n_pad != n_obj:
        packed = jnp.pad(packed, ((0, 0), (0, n_pad - n_obj)))
    grid = (n_pad // tile_n,)

    kernel = functools.partial(
        _bbox_loss_kernel,
        l1_weight=float(l1_weight), giou_weight=float(giou_weight),
        n_obj=n_obj, tile_n=tile_n)

    out = pl.pallas_call(
        kernel,
        out_shape=jax.ShapeDtypeStruct((1,), jnp.float32),
        grid=grid,
        in_specs=[pl.BlockSpec((8, tile_n), lambda i: (0, i))],
        out_specs=pl.BlockSpec(memory_space=pltpu.MemorySpace.SMEM),
        scratch_shapes=[pltpu.SMEM((2,), jnp.float32)],
        compiler_params=pltpu.CompilerParams(
            dimension_semantics=("arbitrary",)),
    )(packed)
    return out[0]


def _reference_loss(pred, target, l1_weight=1.0, giou_weight=1.0):
    """Pure-JAX reference mirroring the PyTorch module (reduction='mean')."""
    pred = jnp.asarray(pred, jnp.float32)
    target = jnp.asarray(target, jnp.float32)
    l1 = jnp.mean(jnp.abs(pred - target))

    def to_xyxy(b):
        cx, cy, w, h = b[:, 0], b[:, 1], b[:, 2], b[:, 3]
        return cx - 0.5 * w, cy - 0.5 * h, cx + 0.5 * w, cy + 0.5 * h

    px0, py0, px1, py1 = to_xyxy(pred)
    tx0, ty0, tx1, ty1 = to_xyxy(target)
    area_p = (px1 - px0) * (py1 - py0)
    area_t = (tx1 - tx0) * (ty1 - ty0)
    iw = jnp.maximum(jnp.minimum(px1, tx1) - jnp.maximum(px0, tx0), 0.0)
    ih = jnp.maximum(jnp.minimum(py1, ty1) - jnp.maximum(py0, ty0), 0.0)
    inter = iw * ih
    union = area_p + area_t - inter
    iou = inter / union
    cw = jnp.maximum(px1, tx1) - jnp.minimum(px0, tx0)
    ch = jnp.maximum(py1, ty1) - jnp.minimum(py0, ty0)
    area_c = jnp.maximum(cw, 0.0) * jnp.maximum(ch, 0.0)
    giou = iou - (area_c - union) / area_c
    per_box = l1_weight * l1 + giou_weight * (1.0 - giou)
    return jnp.mean(per_box)


def bounding_box_loss(pred, target, l1_weight=1.0, giou_weight=1.0,
                      reduction="mean", use_pallas=None):
    """pred, target: [N_obj, 4] in (cx, cy, w, h). Returns scalar loss."""
    # TODO(synk): only the default reduction='mean' is implemented in-kernel.
    assert reduction == "mean"
    n_obj = pred.shape[0]
    assert pred.shape == (n_obj, 4) and target.shape == (n_obj, 4)
    if use_pallas is None:
        # At DETR-typical tiny N the pallas_call launch + host transpose
        # dominates the handful of vreg ops; let XLA fuse the jnp path instead.
        use_pallas = n_obj >= 1024
    if not use_pallas:
        return _reference_loss(pred, target, l1_weight, giou_weight)
    return _bbox_loss_pallas(pred, target, l1_weight, giou_weight)


def _make_boxes(key, n_obj):
    k1, k2 = jax.random.split(key)
    ctr = jax.random.uniform(k1, (n_obj, 2), minval=0.2, maxval=0.8)
    wh = jax.random.uniform(k2, (n_obj, 2), minval=0.1, maxval=0.5)
    return jnp.concatenate([ctr, wh], axis=-1)      # [N_obj, 4] cxcywh


if __name__ == "__main__":
    key = jax.random.PRNGKey(0)
    k_small_p, k_small_t, k_big_p, k_big_t = jax.random.split(key, 4)

    # ---- small N (single tile), forced through the Pallas kernel ----
    n_small = 8
    pred_s = _make_boxes(k_small_p, n_small)
    tgt_s = _make_boxes(k_small_t, n_small)
    loss_s = bounding_box_loss(pred_s, tgt_s, 1.0, 1.0, use_pallas=True)
    loss_s = jax.block_until_ready(loss_s)
    ref_s = _reference_loss(pred_s, tgt_s, 1.0, 1.0)
    assert jnp.allclose(loss_s, ref_s, rtol=1e-5, atol=1e-5), (loss_s, ref_s)

    # ---- larger N (multi-tile grid + partial-tile masking), auto path ----
    n_big = 5000
    pred_b = _make_boxes(k_big_p, n_big)
    tgt_b = _make_boxes(k_big_t, n_big)
    loss_b = bounding_box_loss(pred_b, tgt_b, 2.0, 0.5)
    loss_b = jax.block_until_ready(loss_b)
    ref_b = _reference_loss(pred_b, tgt_b, 2.0, 0.5)
    assert jnp.allclose(loss_b, ref_b, rtol=1e-4, atol=1e-5), (loss_b, ref_b)

    # ---- tiny-N auto path (gated to pure jnp) still matches ----
    loss_gate = jax.block_until_ready(bounding_box_loss(pred_s, tgt_s, 1.0, 1.0))
    assert jnp.allclose(loss_gate, ref_s, rtol=1e-5, atol=1e-5)

    print("KERNEL_OK")
</pallas_src>

<mosaic_0001>
module attributes {stable_mosaic.version = 11 : i64} {
  func.func @_bbox_loss_kernel(%arg0: i32, %arg1: memref<8x128xf32, #tpu.memory_space<vmem>>, %arg2: memref<1xf32, #tpu.memory_space<smem>>, %arg3: memref<2xf32, #tpu.memory_space<smem>>) attributes {dimension_semantics = [#tpu.dimension_semantics<arbitrary>], iteration_bounds = array<i64: 1>, scalar_prefetch = 0 : i64, scratch_operands = 1 : i64, tpu.core_type = #tpu.core_type<tc>, window_params = [{transform_indices = @transform_0, window_bounds = array<i64: 8, 128>}, {transform_indices = @transform_1, window_bounds = array<i64: 1>}]} {
    %c0_i32 = arith.constant 0 : i32
    %0 = arith.cmpi eq, %arg0, %c0_i32 : i32
    %1 = arith.extui %0 : i1 to i32
    %c0_i32_0 = arith.constant 0 : i32
    %2 = arith.cmpi ne, %1, %c0_i32_0 : i32
    scf.if %2 {
      %cst_22 = arith.constant 0.000000e+00 : f32
      %c0_23 = arith.constant 0 : index
      %76 = memref.load %arg3[%c0_23] : memref<2xf32, #tpu.memory_space<smem>>
      memref.store %cst_22, %arg3[%c0_23] : memref<2xf32, #tpu.memory_space<smem>>
      %cst_24 = arith.constant 0.000000e+00 : f32
      %c1_25 = arith.constant 1 : index
      %77 = memref.load %arg3[%c1_25] : memref<2xf32, #tpu.memory_space<smem>>
      memref.store %cst_24, %arg3[%c1_25] : memref<2xf32, #tpu.memory_space<smem>>
    } else {
    }
    %c0 = arith.constant 0 : index
    %c0_1 = arith.constant 0 : index
    %3 = vector.load %arg1[%c0, %c0_1] : memref<8x128xf32, #tpu.memory_space<vmem>>, vector<8x128xf32>
    %c4_i32 = arith.constant 4 : i32
    %4 = tpu.dynamic_rotate %3 by %c4_i32 dim 0 : vector<8x128xf32>, i32 -> vector<8x128xf32>
    %5 = arith.subf %3, %4 : vector<8x128xf32>
    %6 = math.absf %5 : vector<8x128xf32>
    %7 = vector.shape_cast %6 : vector<8x128xf32> to vector<1x8x128xf32>
    %cst = arith.constant dense<0.000000e+00> : vector<1xf32>
    %8 = vector.multi_reduction <add>, %7, %cst [1, 2] : vector<1x8x128xf32> to vector<1xf32>
    %9 = vector.shape_cast %8 : vector<1xf32> to vector<1x1x1xf32>
    %10 = vector.extract %9[0, 0, 0] : f32 from vector<1x1x1xf32>
    %cst_2 = arith.constant 5.000000e-01 : f32
    %11 = arith.mulf %cst_2, %10 : f32
    %c6_i32 = arith.constant 6 : i32
    %12 = tpu.dynamic_rotate %3 by %c6_i32 dim 0 : vector<8x128xf32>, i32 -> vector<8x128xf32>
    %cst_3 = arith.constant 5.000000e-01 : f32
    %13 = vector.broadcast %cst_3 : f32 to vector<8x128xf32>
    %14 = arith.mulf %13, %12 : vector<8x128xf32>
    %15 = arith.subf %3, %14 : vector<8x128xf32>
    %cst_4 = arith.constant 5.000000e-01 : f32
    %16 = vector.broadcast %cst_4 : f32 to vector<8x128xf32>
    %17 = arith.mulf %16, %12 : vector<8x128xf32>
    %18 = arith.addf %3, %17 : vector<8x128xf32>
    %c4_i32_5 = arith.constant 4 : i32
    %19 = tpu.dynamic_rotate %15 by %c4_i32_5 dim 0 : vector<8x128xf32>, i32 -> vector<8x128xf32>
    %c4_i32_6 = arith.constant 4 : i32
    %20 = tpu.dynamic_rotate %18 by %c4_i32_6 dim 0 : vector<8x128xf32>, i32 -> vector<8x128xf32>
    %21 = arith.minimumf %18, %20 : vector<8x128xf32>
    %22 = arith.maximumf %15, %19 : vector<8x128xf32>
    %23 = arith.subf %21, %22 : vector<8x128xf32>
    %cst_7 = arith.constant 0.000000e+00 : f32
    %24 = vector.broadcast %cst_7 : f32 to vector<8x128xf32>
    %25 = arith.maximumf %23, %24 : vector<8x128xf32>
    %c7_i32 = arith.constant 7 : i32
    %26 = tpu.dynamic_rotate %25 by %c7_i32 dim 0 : vector<8x128xf32>, i32 -> vector<8x128xf32>
    %27 = arith.mulf %25, %26 : vector<8x128xf32>
    %28 = arith.subf %18, %15 : vector<8x128xf32>
    %c7_i32_8 = arith.constant 7 : i32
    %29 = tpu.dynamic_rotate %28 by %c7_i32_8 dim 0 : vector<8x128xf32>, i32 -> vector<8x128xf32>
    %30 = arith.mulf %28, %29 : vector<8x128xf32>
    %c4_i32_9 = arith.constant 4 : i32
    %31 = tpu.dynamic_rotate %30 by %c4_i32_9 dim 0 : vector<8x128xf32>, i32 -> vector<8x128xf32>
    %32 = arith.maximumf %18, %20 : vector<8x128xf32>
    %33 = arith.minimumf %15, %19 : vector<8x128xf32>
    %34 = arith.subf %32, %33 : vector<8x128xf32>
    %cst_10 = arith.constant 0.000000e+00 : f32
    %35 = vector.broadcast %cst_10 : f32 to vector<8x128xf32>
    %36 = arith.maximumf %34, %35 : vector<8x128xf32>
    %c7_i32_11 = arith.constant 7 : i32
    %37 = tpu.dynamic_rotate %36 by %c7_i32_11 dim 0 : vector<8x128xf32>, i32 -> vector<8x128xf32>
    %38 = arith.mulf %36, %37 : vector<8x128xf32>
    %39 = vector.extract_strided_slice %27 {offsets = [0, 0], sizes = [1, 128], strides = [1, 1]} : vector<8x128xf32> to vector<1x128xf32>
    %40 = vector.extract_strided_slice %30 {offsets = [0, 0], sizes = [1, 128], strides = [1, 1]} : vector<8x128xf32> to vector<1x128xf32>
    %41 = vector.extract_strided_slice %31 {offsets = [0, 0], sizes = [1, 128], strides = [1, 1]} : vector<8x128xf32> to vector<1x128xf32>
    %42 = vector.extract_strided_slice %38 {offsets = [0, 0], sizes = [1, 128], strides = [1, 1]} : vector<8x128xf32> to vector<1x128xf32>
    %43 = arith.addf %40, %41 : vector<1x128xf32>
    %44 = arith.subf %43, %39 : vector<1x128xf32>
    %45 = tpu.iota {dimensions = array<i32: 1>} : vector<1x128xi32>
    %c128_i32 = arith.constant 128 : i32
    %46 = arith.muli %arg0, %c128_i32 : i32
    %47 = vector.broadcast %46 : i32 to vector<1x128xi32>
    %48 = arith.addi %45, %47 : vector<1x128xi32>
    %c8_i32 = arith.constant 8 : i32
    %49 = vector.broadcast %c8_i32 : i32 to vector<1x128xi32>
    %50 = arith.cmpi slt, %48, %49 : vector<1x128xi32>
    %cst_12 = arith.constant 1.000000e+00 : f32
    %51 = vector.broadcast %cst_12 : f32 to vector<1x128xf32>
    %52 = arith.select %50, %44, %51 : vector<1x128xi1>, vector<1x128xf32>
    %cst_13 = arith.constant 1.000000e+00 : f32
    %53 = vector.broadcast %cst_13 : f32 to vector<1x128xf32>
    %54 = arith.select %50, %42, %53 : vector<1x128xi1>, vector<1x128xf32>
    %55 = arith.divf %39, %52 : vector<1x128xf32>
    %56 = arith.subf %54, %52 : vector<1x128xf32>
    %57 = arith.divf %56, %54 : vector<1x128xf32>
    %58 = arith.subf %55, %57 : vector<1x128xf32>
    %cst_14 = arith.constant 1.000000e+00 : f32
    %59 = vector.broadcast %cst_14 : f32 to vector<1x128xf32>
    %60 = arith.subf %59, %58 : vector<1x128xf32>
    %cst_15 = arith.constant 0.000000e+00 : f32
    %61 = vector.broadcast %cst_15 : f32 to vector<1x128xf32>
    %62 = arith.select %50, %60, %61 : vector<1x128xi1>, vector<1x128xf32>
    %c0_16 = arith.constant 0 : index
    %63 = memref.load %arg3[%c0_16] : memref<2xf32, #tpu.memory_space<smem>>
    %64 = arith.addf %63, %11 : f32
    %c0_17 = arith.constant 0 : index
    %65 = memref.load %arg3[%c0_17] : memref<2xf32, #tpu.memory_space<smem>>
    memref.store %64, %arg3[%c0_17] : memref<2xf32, #tpu.memory_space<smem>>
    %c1 = arith.constant 1 : index
    %66 = memref.load %arg3[%c1] : memref<2xf32, #tpu.memory_space<smem>>
    %67 = vector.shape_cast %62 : vector<1x128xf32> to vector<1x1x128xf32>
    %cst_18 = arith.constant dense<0.000000e+00> : vector<1xf32>
    %68 = vector.multi_reduction <add>, %67, %cst_18 [1, 2] : vector<1x1x128xf32> to vector<1xf32>
    %69 = vector.shape_cast %68 : vector<1xf32> to vector<1x1x1xf32>
    %70 = vector.extract %69[0, 0, 0] : f32 from vector<1x1x1xf32>
    %71 = arith.addf %66, %70 : f32
    %c1_19 = arith.constant 1 : index
    %72 = memref.load %arg3[%c1_19] : memref<2xf32, #tpu.memory_space<smem>>
    memref.store %71, %arg3[%c1_19] : memref<2xf32, #tpu.memory_space<smem>>
    %c0_i32_20 = arith.constant 0 : i32
    %73 = arith.cmpi eq, %arg0, %c0_i32_20 : i32
    %74 = arith.extui %73 : i1 to i32
    %c0_i32_21 = arith.constant 0 : i32
    %75 = arith.cmpi ne, %74, %c0_i32_21 : i32
    scf.if %75 {
      %c0_22 = arith.constant 0 : index
      %76 = memref.load %arg3[%c0_22] : memref<2xf32, #tpu.memory_space<smem>>
      %cst_23 = arith.constant 3.200000e+01 : f32
      %77 = arith.divf %76, %cst_23 : f32
      %c1_24 = arith.constant 1 : index
      %78 = memref.load %arg3[%c1_24] : memref<2xf32, #tpu.memory_space<smem>>
      %cst_25 = arith.constant 8.000000e+00 : f32
      %79 = arith.divf %78, %cst_25 : f32
      %cst_26 = arith.constant 1.000000e+00 : f32
      %80 = arith.mulf %cst_26, %77 : f32
      %cst_27 = arith.constant 1.000000e+00 : f32
      %81 = arith.mulf %cst_27, %79 : f32
      %82 = arith.addf %80, %81 : f32
      %c0_28 = arith.constant 0 : index
      %83 = memref.load %arg2[%c0_28] : memref<1xf32, #tpu.memory_space<smem>>
      memref.store %82, %arg2[%c0_28] : memref<1xf32, #tpu.memory_space<smem>>
    } else {
    }
    return
  }
  func.func @transform_0(%arg0: i32) -> (i32, i32) {
    %c0_i32 = arith.constant 0 : i32
    %c0_i32_0 = arith.constant 0 : i32
    return %c0_i32, %arg0 : i32, i32
  }
  func.func @transform_1(%arg0: i32) -> i32 {
    %c0_i32 = arith.constant 0 : i32
    %c0_i32_0 = arith.constant 0 : i32
    return %c0_i32 : i32
  }
}

</mosaic_0001>

<llo_original>
// kernel: tpu_custom_call.1
$region0: #{tpu_custom_call.1}
  #allocation0 [shape = 'u32[]', space=smem, size = 0x4, offset = 0x4, fixed_abs, tag = 'smem constant byte address 0x4 - core index']
  #allocation1 [shape = 'u32[144,128]{1,0:T(1,128)}', space=vmem, size = 0x12000, scoped, tag = 'internal scratch']
  #allocation2 [shape = 'f32[2]{0:T(128)}', space=smem, size = 0x200, scoped, tag = 'scratch operand']
  %s0 = inlined_call_operand.hbm [shape: f32[8,128], index: 0, kind: input, shape index: {}]
  %s1 = inlined_call_operand.hbm [shape: f32[1], index: 1, kind: output, shape index: {}]
  %s2 = sld [smem:[#allocation0]]
  $region26: #{tpu_custom_call.1} parent=0
    _
  %s4 = ssub.s32 1, %s2
  %s5 = scalar_select 0, %s4, %s2
  $region1: #{tpu_custom_call.1} parent=0
    #allocation3 [shape = 'u8[4096]{0}', space=vmem, size = 0x1000, scoped, tag = 'input window, operand 0, single buffered']
    #allocation4 [shape = 's32[1]{0}', space=sflag, size = 0x4, scoped, tag = 'scoped memory for tpu_custom_call.1']
    #allocation5 [shape = 's32[1]{0}', space=sflag, size = 0x4, scoped, tag = 'scoped memory for tpu_custom_call.1']
    #allocation6 [shape = 'u8[512]{0}', space=smem, size = 0x200, scoped, tag = 'output window, operand 0, single buffered']
    %6 = vsyncpa [#allocation4], 0
    %7 = vsyncpa [#allocation5], 0
    // Predicated region
    $region2: #{tpu_custom_call.1} parent=1 // pred_check
      _
    $region3: #{tpu_custom_call.1} parent=1 // pred_check_branch
      %9 = sbr.rel (0) target = $region5
    $region4: #{tpu_custom_call.1} parent=1 // pred_region
      %s11 = ssub.s32 128, 128
      %12 = vsyncadd [#allocation4], %s11
      %s14 = sshll.u32 [#allocation3], 4
      %s15 = int_to_ptr.vmem [resolvable:$true] %s14
      %17 = dma.hbm_to_vmem [thread:$0]  %s0, 128, %s15, [#allocation4]
    $region5: #{tpu_custom_call.1} parent=1 // pred_fallthru
      _
    // Predicated region
    $region6: #{tpu_custom_call.1} parent=1 // pred_check
      _
    $region7: #{tpu_custom_call.1} parent=1 // pred_check_branch
      %19 = sbr.rel (0) target = $region9
    $region8: #{tpu_custom_call.1} parent=1 // pred_region
      %20 = dma.done [#allocation4], 128
    $region9: #{tpu_custom_call.1} parent=1 // pred_fallthru
      _
    %p21 = scmp.eq.s32.totalorder 0, 0
    // Predicated region
    $region10: #{tpu_custom_call.1} parent=1 // pred_check
      %p22 = pneg %p21
    $region11: #{tpu_custom_call.1} parent=1 // pred_check_branch
      %24 = sbr.rel (%p22) target = $region13
    $region12: #{tpu_custom_call.1} parent=1 // pred_region
      %s25 = scalar_lea.smem [#allocation2], 0
      %26 = sst [smem:[%s25]] 0.0
      %s27 = scalar_lea.smem [#allocation2], 1
      %28 = sst [smem:[%s27]] 0.0
    $region13: #{tpu_custom_call.1} parent=1 // pred_fallthru
      _
    %v29 = vld [vmem:[#allocation3] sm:$0xff]
    %v30 = vrot.slane %v29, 4
    %v31 = vsub.f32 %v29, %v30
    %v32 = vand.u32 2147483647, %v31
    %33 = vadd.xlane.f32.xlu0 %v32
    %v34 = vpop.xlane.xlu0 %33
    %v35 = vrot.slane %v34, 4
    %v36 = vadd.f32 %v34, %v35
    %v37 = vrot.slane %v36, 2
    %v38 = vadd.f32 %v36, %v37
    %v39 = vrot.slane %v38, 1
    %v40 = vadd.f32 %v38, %v39
    %s41 = vtos %v40
    %s42 = smul.f32 %s41, 0.5
    %v43 = vrot.slane %v29, 2
    %v44 = vmul.f32 %v43, 0.5
    %v45 = vsub.f32 %v29, %v44
    %v46 = vadd.f32 %v29, %v44
    %v47 = vrot.slane %v45, 4
    %v48 = vrot.slane %v46, 4
    %v49 = vmin.f32 %v46, %v48
    %v50 = vmax.f32 %v45, %v47
    %v51 = vsub.f32 %v49, %v50
    %v52 = vmax.f32 %v51, 0.0
    %v53 = vrot.slane %v52, 1
    %v54 = vmul.f32 %v52, %v53
    %v55 = vsub.f32 %v46, %v45
    %v56 = vrot.slane %v55, 1
    %v57 = vmul.f32 %v55, %v56
    %v58 = vrot.slane %v57, 4
    %v59 = vmax.f32 %v46, %v48
    %v60 = vmin.f32 %v45, %v47
    %v61 = vsub.f32 %v59, %v60
    %v62 = vmax.f32 %v61, 0.0
    %v63 = vrot.slane %v62, 1
    %v64 = vmul.f32 %v62, %v63
    %v65 = vadd.f32 %v57, %v58
    %v66 = vsub.f32 %v65, %v54
    %v67 = vlaneseq
    %v68 = vand.u32 %v67, 127
    %s69 = smul.u32 0, 128
    %v70 = vstv %s69
    %v71 = vadd.s32 %v68, %v70
    %vm72 = vcmp.lt.s32.totalorder %v71, 8
    %v73 = vsel %vm72, %v66, 1.0
    %v74 = vsel %vm72, %v64, 1.0
    %v75 = vrcp.pop %v73
    %v76 = vmul.f32 %v54, %v75
    %v77 = vsub.f32 %v74, %v73
    %v78 = vrcp.pop %v74
    %v79 = vmul.f32 %v77, %v78
    %v80 = vsub.f32 %v76, %v79
    %v81 = vsub.f32 1.0, %v80
    %v82 = vsel %vm72, %v81, 0.0
    %s83 = sld [smem:[#allocation2]]
    %s84 = sadd.f32 %s83, %s42
    %s85 = scalar_lea.smem [#allocation2], 0
    %86 = sst [smem:[%s85]] %s84
    %s87 = sld [smem:[#allocation2 + $0x1]]
    %vm88 = vcmask 1040384
    %v89 = vsel %vm88, %v82, 0.0
    %90 = vadd.xlane.f32.xlu0 %v89
    %v91 = vpop.xlane.xlu0 %90
    %v92 = vrot.slane %v91, 4
    %v93 = vadd.f32 %v91, %v92
    %v94 = vrot.slane %v93, 2
    %v95 = vadd.f32 %v93, %v94
    %v96 = vrot.slane %v95, 1
    %v97 = vadd.f32 %v95, %v96
    %s98 = vtos %v97
    %s99 = sadd.f32 %s87, %s98
    %s100 = scalar_lea.smem [#allocation2], 1
    %101 = sst [smem:[%s100]] %s99
    // Predicated region
    $region14: #{tpu_custom_call.1} parent=1 // pred_check
      %p102 = pneg %p21
    $region15: #{tpu_custom_call.1} parent=1 // pred_check_branch
      %104 = sbr.rel (%p102) target = $region17
    $region16: #{tpu_custom_call.1} parent=1 // pred_region
      %s105 = sld [smem:[#allocation2]]
      %v106 = vrcp.pop 32.0
      %s107 = vtos %v106
      %s108 = smul.f32 %s105, %s107
      %s109 = sld [smem:[#allocation2 + $0x1]]
      %v110 = vrcp.pop 8.0
      %s111 = vtos %v110
      %s112 = smul.f32 %s109, %s111
      %s113 = sadd.f32 %s108, %s112
      %s114 = scalar_lea.smem [#allocation6], 0
      %115 = sst [smem:[%s114]] %s113
    $region17: #{tpu_custom_call.1} parent=1 // pred_fallthru
      _
    // Predicated region
    $region18: #{tpu_custom_call.1} parent=1 // pred_check
      _
    $region19: #{tpu_custom_call.1} parent=1 // pred_check_branch
      %117 = sbr.rel (0) target = $region21
    $region20: #{tpu_custom_call.1} parent=1 // pred_region
      %s119 = ssub.s32 16, 16
      %120 = vsyncadd [#allocation5], %s119
      %123 = dma.smem_to_hbm [#allocation6], 16, %s1, [#allocation5]
    $region21: #{tpu_custom_call.1} parent=1 // pred_fallthru
      _
    // Predicated region
    $region22: #{tpu_custom_call.1} parent=1 // pred_check
      _
    $region23: #{tpu_custom_call.1} parent=1 // pred_check_branch
      %125 = sbr.rel (0) target = $region25
    $region24: #{tpu_custom_call.1} parent=1 // pred_region
      %126 = dma.done [#allocation5], 16
    $region25: #{tpu_custom_call.1} parent=1 // pred_fallthru
      _
    %127 = sfence
    %128 = vsyncpa [#allocation4], 1
    %129 = vsyncpa [#allocation5], 1

</llo_original>
